<compile_context>
chip_gen: v5e
topology: v5e:2x2
jax: 0.10.0
libtpu: 0.0.40
codegen_flags: <defaults>
</compile_context>

<pallas_src>
import functools

import jax
import jax.numpy as jnp
from jax import lax
from jax.experimental import pallas as pl
from jax.experimental.pallas import tpu as pltpu


def _round_up(x, m):
    return ((x + m - 1) // m) * m


# ---------------------------------------------------------------------------
# Pallas kernels: fused GEMM + bias (+ residual) (+ ReLU)
# ---------------------------------------------------------------------------
def _gemm_bias_kernel(p_ref, w_ref, b_ref, o_ref, *, relu):
    acc = jnp.dot(p_ref[...], w_ref[...], preferred_element_type=jnp.float32)
    y = acc + b_ref[...]
    if relu:
        y = jnp.maximum(y, 0.0)
    o_ref[...] = y.astype(o_ref.dtype)


def _gemm_bias_res_kernel(p_ref, w_ref, b_ref, r_ref, o_ref, *, relu):
    acc = jnp.dot(p_ref[...], w_ref[...], preferred_element_type=jnp.float32)
    y = acc + b_ref[...] + r_ref[...]
    if relu:
        y = jnp.maximum(y, 0.0)
    o_ref[...] = y.astype(o_ref.dtype)


def _fused_gemm(patches, w_mat, bias, residual=None, relu=False, tm_max=1024):
    """relu?(patches @ w_mat + bias (+ residual)) in one pallas_call."""
    m, k = patches.shape
    n = w_mat.shape[1]

    # Pick the row tile so the last block has minimal dead rows.
    nb = -(-m // tm_max)                       # number of row blocks
    tm = _round_up(-(-m // nb), 8)             # sublane-aligned tile
    m_pad = nb * tm
    if m_pad != m:
        patches = jnp.pad(patches, ((0, m_pad - m), (0, 0)))
        if residual is not None:
            residual = jnp.pad(residual, ((0, m_pad - m), (0, 0)))

    bias2 = bias.reshape(1, n).astype(jnp.float32)

    in_specs = [
        pl.BlockSpec((tm, k), lambda i: (i, 0)),      # patch row-block
        pl.BlockSpec((k, n), lambda i: (0, 0)),       # BN-folded weights
        pl.BlockSpec((1, n), lambda i: (0, 0)),       # folded BN bias
    ]
    args = [patches.astype(jnp.float32), w_mat.astype(jnp.float32), bias2]
    if residual is not None:
        in_specs.append(pl.BlockSpec((tm, n), lambda i: (i, 0)))
        args.append(residual.astype(jnp.float32))
        kernel = functools.partial(_gemm_bias_res_kernel, relu=relu)
    else:
        kernel = functools.partial(_gemm_bias_kernel, relu=relu)

    out = pl.pallas_call(
        kernel,
        out_shape=jax.ShapeDtypeStruct((m_pad, n), jnp.float32),
        grid_spec=pltpu.PrefetchScalarGridSpec(
            num_scalar_prefetch=0,
            grid=(nb,),
            in_specs=in_specs,
            out_specs=pl.BlockSpec((tm, n), lambda i: (i, 0)),
        ),
        compiler_params=pltpu.CompilerParams(
            dimension_semantics=("parallel",)),
    )(*args)
    return out[:m] if m_pad != m else out


# ---------------------------------------------------------------------------
# Layout plumbing: im2col, conv / transposed-conv wrappers, BN folding
# ---------------------------------------------------------------------------
def _im2col(x_nhwc, kh, kw, stride, pad_lo, pad_hi):
    n, h, w, c = x_nhwc.shape
    xp = jnp.pad(x_nhwc, ((0, 0), (pad_lo, pad_hi), (pad_lo, pad_hi), (0, 0)))
    hp = h + pad_lo + pad_hi
    wp = w + pad_lo + pad_hi
    ho = (hp - kh) // stride + 1
    wo = (wp - kw) // stride + 1
    taps = []
    for dy in range(kh):
        for dx in range(kw):
            taps.append(lax.slice(
                xp,
                (0, dy, dx, 0),
                (n, dy + stride * (ho - 1) + 1, dx + stride * (wo - 1) + 1, c),
                (1, stride, stride, 1)))
    patches = jnp.concatenate(taps, axis=-1)          # (n, ho, wo, kh*kw*c)
    return patches.reshape(n * ho * wo, kh * kw * c), (n, ho, wo)


def _conv3x3(x_nhwc, w_oihw, scale, bias, stride, residual_nhwc=None,
             relu=False):
    cout, cin = w_oihw.shape[0], w_oihw.shape[1]
    patches, (n, ho, wo) = _im2col(x_nhwc, 3, 3, stride, 1, 1)
    # K ordering = (dy, dx, cin); fold BN scale into the weights:
    #   (conv * s + b) == conv_with(W * s) + b
    w_mat = (jnp.transpose(w_oihw, (2, 3, 1, 0)).reshape(9 * cin, cout)
             * scale.reshape(1, cout))
    res = None
    if residual_nhwc is not None:
        res = residual_nhwc.reshape(n * ho * wo, cout)
    y = _fused_gemm(patches, w_mat, bias, residual=res, relu=relu)
    return y.reshape(n, ho, wo, cout)


def _deconv3x3_s2(x_nhwc, wt_iohw, scale, bias, relu=False):
    # ConvTranspose2d(k=3, stride=2, padding=1, output_padding=1, bias=False),
    # decomposed into its 4 output phases y[2i+r, 2j+s].  Each phase only
    # touches the 2x2 input neighbourhood {x[i+a, j+b]}, so all four phases
    # are evaluated with ONE GEMM: patches (M, 4*cin) @ W (4*cin, 4*cout).
    # No zero-dilated intermediate, 2.25x less MXU work than naive dilation,
    # and a 4x lane-denser output block.
    n, h, w, cin = x_nhwc.shape
    cout = wt_iohw.shape[1]

    # Equivalent forward-conv taps: w_eq[dy, dx, ci, co] = wt[ci, co, 2-dy, 2-dx]
    w_eq = jnp.transpose(jnp.flip(wt_iohw, axis=(2, 3)), (2, 3, 0, 1))

    # w4[a, b, cin, r, s, cout]: contribution of input tap x[i+a, j+b] to
    # output phase y[2i+r, 2j+s].
    w4 = jnp.zeros((2, 2, cin, 2, 2, cout), jnp.float32)
    w4 = w4.at[0, 0, :, 0, 0, :].set(w_eq[1, 1])
    w4 = w4.at[0, 0, :, 0, 1, :].set(w_eq[1, 0])
    w4 = w4.at[0, 1, :, 0, 1, :].set(w_eq[1, 2])
    w4 = w4.at[0, 0, :, 1, 0, :].set(w_eq[0, 1])
    w4 = w4.at[1, 0, :, 1, 0, :].set(w_eq[2, 1])
    w4 = w4.at[0, 0, :, 1, 1, :].set(w_eq[0, 0])
    w4 = w4.at[0, 1, :, 1, 1, :].set(w_eq[0, 2])
    w4 = w4.at[1, 0, :, 1, 1, :].set(w_eq[2, 0])
    w4 = w4.at[1, 1, :, 1, 1, :].set(w_eq[2, 2])

    # Fold BN scale (per cout, same for every phase) into the weights.
    w_mat = (w4 * scale.reshape(1, 1, 1, 1, 1, cout)).reshape(4 * cin, 4 * cout)
    bias4 = jnp.tile(bias.reshape(1, cout), (4, 1)).reshape(4 * cout)

    # 2x2 patches, stride 1, high-side zero pad of 1 row / col.
    patches, _ = _im2col(x_nhwc, 2, 2, 1, 0, 1)             # (n*h*w, 4*cin)
    y = _fused_gemm(patches, w_mat, bias4, relu=relu)        # (n*h*w, 4*cout)

    y = y.reshape(n, h, w, 2, 2, cout)                       # (..., r, s, c)
    y = jnp.transpose(y, (0, 1, 3, 2, 4, 5)).reshape(n, 2 * h, 2 * w, cout)
    return y


def _bn_fold(bn, eps=1e-5):
    gamma, beta, mean, var = bn
    scale = gamma / jnp.sqrt(var + eps)
    return scale, beta - mean * scale


def hourglass2_forward(x, em1, em2, p):
    """x: (N, C, H, W), em1: (N, 2C, H/2, W/2), em2: (N, 4C, H/4, W/4)."""
    xh = jnp.transpose(x, (0, 2, 3, 1))
    em1h = jnp.transpose(em1, (0, 2, 3, 1))
    em2h = jnp.transpose(em2, (0, 2, 3, 1))

    s1, b1 = _bn_fold(p["bn1"])
    h = _conv3x3(xh, p["w1"], s1, b1, stride=2, relu=True)

    c2 = p["w2"].shape[0]
    h = _conv3x3(h, p["w2"], jnp.ones((c2,), jnp.float32),
                 jnp.zeros((c2,), jnp.float32), stride=1,
                 residual_nhwc=em1h, relu=True)

    s3, b3 = _bn_fold(p["bn3"])
    z = _conv3x3(h, p["w3"], s3, b3, stride=2, relu=True)

    c4 = p["w4"].shape[0]
    z = _conv3x3(z, p["w4"], jnp.ones((c4,), jnp.float32),
                 jnp.zeros((c4,), jnp.float32), stride=1,
                 residual_nhwc=em2h, relu=True)

    s5, b5 = _bn_fold(p["bn5"])
    o = _deconv3x3_s2(z, p["wt5"], s5, b5, relu=True)

    s6, b6 = _bn_fold(p["bn6"])
    o = _deconv3x3_s2(o, p["wt6"], s6, b6, relu=False)

    return jnp.transpose(o, (0, 3, 1, 2))


# ---------------------------------------------------------------------------
# Independent JAX reference (lax.conv_general_dilated) for verification
# ---------------------------------------------------------------------------
def _ref_forward(x, em1, em2, p):
    dn = ("NCHW", "OIHW", "NCHW")
    prec = lax.Precision.HIGHEST

    def conv(a, w, stride):
        return lax.conv_general_dilated(
            a, w, (stride, stride), ((1, 1), (1, 1)),
            dimension_numbers=dn, precision=prec)

    def deconv(a, wt):
        w_eq = jnp.transpose(jnp.flip(wt, axis=(2, 3)), (1, 0, 2, 3))
        return lax.conv_general_dilated(
            a, w_eq, (1, 1), ((1, 2), (1, 2)), lhs_dilation=(2, 2),
            dimension_numbers=dn, precision=prec)

    def bn(a, bnp, eps=1e-5):
        g, b, m, v = bnp
        s = g / jnp.sqrt(v + eps)
        return a * s[None, :, None, None] + (b - m * s)[None, :, None, None]

    h = jax.nn.relu(bn(conv(x, p["w1"], 2), p["bn1"]))
    h = jax.nn.relu(conv(h, p["w2"], 1) + em1)
    z = jax.nn.relu(bn(conv(h, p["w3"], 2), p["bn3"]))
    z = jax.nn.relu(conv(z, p["w4"], 1) + em2)
    o = jax.nn.relu(bn(deconv(z, p["wt5"]), p["bn5"]))
    o = bn(deconv(o, p["wt6"]), p["bn6"])
    return o


if __name__ == "__main__":
    key = jax.random.PRNGKey(0)
    keys = jax.random.split(key, 16)

    N, C, H, W = 2, 4, 16, 16

    def wconv(k, cout, cin):
        std = (2.0 / (9 * cin)) ** 0.5
        return std * jax.random.normal(k, (cout, cin, 3, 3), jnp.float32)

    def wdeconv(k, cin, cout):
        std = (2.0 / (9 * cin)) ** 0.5
        return std * jax.random.normal(k, (cin, cout, 3, 3), jnp.float32)

    def bn_params(k, c):
        k1, k2, k3, k4 = jax.random.split(k, 4)
        gamma = jax.random.uniform(k1, (c,), jnp.float32, 0.5, 1.5)
        beta = 0.1 * jax.random.normal(k2, (c,), jnp.float32)
        mean = 0.1 * jax.random.normal(k3, (c,), jnp.float32)
        var = jax.random.uniform(k4, (c,), jnp.float32, 0.5, 1.5)
        return (gamma, beta, mean, var)

    params = {
        "w1": wconv(keys[0], 2 * C, C),
        "bn1": bn_params(keys[1], 2 * C),
        "w2": wconv(keys[2], 2 * C, 2 * C),
        "w3": wconv(keys[3], 2 * C, 2 * C),
        "bn3": bn_params(keys[4], 2 * C),
        "w4": wconv(keys[5], 4 * C, 2 * C),
        "wt5": wdeconv(keys[6], 4 * C, 2 * C),
        "bn5": bn_params(keys[7], 2 * C),
        "wt6": wdeconv(keys[8], 2 * C, C),
        "bn6": bn_params(keys[9], C),
    }

    x = jax.random.normal(keys[10], (N, C, H, W), jnp.float32)
    em1 = 0.5 * jax.random.normal(keys[11], (N, 2 * C, H // 2, W // 2),
                                  jnp.float32)
    em2 = 0.5 * jax.random.normal(keys[12], (N, 4 * C, H // 4, W // 4),
                                  jnp.float32)

    out = hourglass2_forward(x, em1, em2, params)
    out = jax.block_until_ready(out)

    ref = jax.block_until_ready(_ref_forward(x, em1, em2, params))

    assert out.shape == (N, C, H, W), out.shape
    assert jnp.allclose(out, ref, rtol=1e-2, atol=1e-2), (
        "max abs diff:", float(jnp.max(jnp.abs(out - ref))))

    print("KERNEL_OK")
</pallas_src>

<mosaic_0001>
module attributes {stable_mosaic.version = 11 : i64} {
  func.func @_gemm_bias_kernel(%arg0: i32, %arg1: memref<128x36xf32, #tpu.memory_space<vmem>>, %arg2: memref<36x8xf32, #tpu.memory_space<vmem>>, %arg3: memref<1x8xf32, #tpu.memory_space<vmem>>, %arg4: memref<128x8xf32, #tpu.memory_space<vmem>>) attributes {dimension_semantics = [#tpu.dimension_semantics<parallel>], iteration_bounds = array<i64: 1>, scalar_prefetch = 0 : i64, scratch_operands = 0 : i64, tpu.core_type = #tpu.core_type<tc>, window_params = [{transform_indices = @transform_0, window_bounds = array<i64: 128, 36>}, {pipeline_mode = #tpu.pipeline_mode<synchronous>, transform_indices = @transform_1, window_bounds = array<i64: 36, 8>}, {pipeline_mode = #tpu.pipeline_mode<synchronous>, transform_indices = @transform_2, window_bounds = array<i64: 1, 8>}, {transform_indices = @transform_3, window_bounds = array<i64: 128, 8>}]} {
    %c0 = arith.constant 0 : index
    %c0_0 = arith.constant 0 : index
    %0 = vector.load %arg1[%c0, %c0_0] : memref<128x36xf32, #tpu.memory_space<vmem>>, vector<128x36xf32>
    %c0_1 = arith.constant 0 : index
    %c0_2 = arith.constant 0 : index
    %1 = vector.load %arg2[%c0_1, %c0_2] : memref<36x8xf32, #tpu.memory_space<vmem>>, vector<36x8xf32>
    %cst = arith.constant dense<0.000000e+00> : vector<128x8xf32>
    %2 = tpu.matmul %0, %1, %cst {dimension_numbers = #tpu.dot_dimension_numbers<[1], [0], [0], [1], [0, 0, 1, 1], [], []>} : vector<128x36xf32>, vector<36x8xf32>, vector<128x8xf32> -> vector<128x8xf32>
    %c0_3 = arith.constant 0 : index
    %c0_4 = arith.constant 0 : index
    %3 = vector.load %arg3[%c0_3, %c0_4] : memref<1x8xf32, #tpu.memory_space<vmem>>, vector<1x8xf32>
    %4 = vector.broadcast %3 : vector<1x8xf32> to vector<128x8xf32>
    %5 = arith.addf %2, %4 : vector<128x8xf32>
    %cst_5 = arith.constant 0.000000e+00 : f32
    %6 = vector.broadcast %cst_5 : f32 to vector<128x8xf32>
    %7 = arith.maximumf %5, %6 : vector<128x8xf32>
    %c0_6 = arith.constant 0 : index
    %c0_7 = arith.constant 0 : index
    %8 = vector.load %arg4[%c0_6, %c0_7] : memref<128x8xf32, #tpu.memory_space<vmem>>, vector<128x8xf32>
    tpu.vector_store %arg4[%c0_6, %c0_7], %7 {strides = array<i32>} : memref<128x8xf32, #tpu.memory_space<vmem>>, vector<128x8xf32>,
    return
  }
  func.func @transform_0(%arg0: i32) -> (i32, i32) {
    %c0_i32 = arith.constant 0 : i32
    %c0_i32_0 = arith.constant 0 : i32
    return %arg0, %c0_i32 : i32, i32
  }
  func.func @transform_1(%arg0: i32) -> (i32, i32) {
    %c0_i32 = arith.constant 0 : i32
    %c0_i32_0 = arith.constant 0 : i32
    %c0_i32_1 = arith.constant 0 : i32
    return %c0_i32, %c0_i32_0 : i32, i32
  }
  func.func @transform_2(%arg0: i32) -> (i32, i32) {
    %c0_i32 = arith.constant 0 : i32
    %c0_i32_0 = arith.constant 0 : i32
    %c0_i32_1 = arith.constant 0 : i32
    return %c0_i32, %c0_i32_0 : i32, i32
  }
  func.func @transform_3(%arg0: i32) -> (i32, i32) {
    %c0_i32 = arith.constant 0 : i32
    %c0_i32_0 = arith.constant 0 : i32
    return %arg0, %c0_i32 : i32, i32
  }
}

</mosaic_0001>

<llo_original>
// kernel: tpu_custom_call.1
$region0: #{tpu_custom_call.1}
  #allocation0 [shape = 'u32[]', space=smem, size = 0x4, offset = 0x4, fixed_abs, tag = 'smem constant byte address 0x4 - core index']
  #allocation1 [shape = 'u32[72,128]{1,0:T(1,128)}', space=vmem, size = 0x9000, scoped, tag = 'internal scratch']
  %s0 = inlined_call_operand.vmem [shape: f32[128,36], index: 0, kind: input, shape index: {}]
  %s1 = inlined_call_operand.vmem [shape: f32[36,8], index: 1, kind: input, shape index: {}]
  %s2 = inlined_call_operand.vmem [shape: f32[1,8], index: 2, kind: input, shape index: {}]
  %s3 = inlined_call_operand.vmem [shape: f32[128,8], index: 3, kind: output, shape index: {}]
  %s4 = sld [smem:[#allocation0]]
  $region22: #{tpu_custom_call.1} parent=0
    _
  %s6 = ssub.s32 1, %s4
  %s7 = scalar_select 0, %s6, %s4
  // Predicated region
  $region2: #{tpu_custom_call.1} parent=0 // pred_check
    _
  $region3: #{tpu_custom_call.1} parent=0 // pred_check_branch
    %9 = sbr.rel (0) target = $region5
  $region4: #{tpu_custom_call.1} parent=0 // pred_region
    _
  $region5: #{tpu_custom_call.1} parent=0 // pred_fallthru
    _
  // Predicated region
  $region6: #{tpu_custom_call.1} parent=0 // pred_check
    _
  $region7: #{tpu_custom_call.1} parent=0 // pred_check_branch
    %11 = sbr.rel (0) target = $region9
  $region8: #{tpu_custom_call.1} parent=0 // pred_region
    _
  $region9: #{tpu_custom_call.1} parent=0 // pred_fallthru
    _
  // Predicated region
  $region10: #{tpu_custom_call.1} parent=0 // pred_check
    _
  $region11: #{tpu_custom_call.1} parent=0 // pred_check_branch
    %13 = sbr.rel (0) target = $region13
  $region12: #{tpu_custom_call.1} parent=0 // pred_region
    _
  $region13: #{tpu_custom_call.1} parent=0 // pred_fallthru
    _
  %v14 = vld [vmem:[%s0] sm:$0xff]
  %v15 = vld [vmem:[%s0 + $0x8] sm:$0xff]
  %v16 = vld [vmem:[%s0 + $0x10] sm:$0xff]
  %v17 = vld [vmem:[%s0 + $0x18] sm:$0xff]
  %v18 = vld [vmem:[%s0 + $0x20] sm:$0xff]
  %v19 = vld [vmem:[%s0 + $0x28] sm:$0xff]
  %v20 = vld [vmem:[%s0 + $0x30] sm:$0xff]
  %v21 = vld [vmem:[%s0 + $0x38] sm:$0xff]
  %v22 = vld [vmem:[%s0 + $0x40] sm:$0xff]
  %v23 = vld [vmem:[%s0 + $0x48] sm:$0xff]
  %v24 = vld [vmem:[%s0 + $0x50] sm:$0xff]
  %v25 = vld [vmem:[%s0 + $0x58] sm:$0xff]
  %v26 = vld [vmem:[%s0 + $0x60] sm:$0xff]
  %v27 = vld [vmem:[%s0 + $0x68] sm:$0xff]
  %v28 = vld [vmem:[%s0 + $0x70] sm:$0xff]
  %v29 = vld [vmem:[%s0 + $0x78] sm:$0xff]
  %v30 = vld [vmem:[%s1] sm:$0xff]
  %v31 = vld [vmem:[%s1 + $0x8] sm:$0xff]
  %v32 = vld [vmem:[%s1 + $0x10] sm:$0xff]
  %v33 = vld [vmem:[%s1 + $0x18] sm:$0xff]
  %v34 = vld [vmem:[%s1 + $0x20] sm:$0xf]
  %v35 = vld [vmem:[%s2] sm:$0x1]
  %v37 = vperm.slane %v35, 0
  %vm39 = vcmask 293888
  %v41 = vsel %vm39, %v14, 0
  %v44 = vsel %vm39, %v15, 0
  %v47 = vsel %vm39, %v16, 0
  %v50 = vsel %vm39, %v17, 0
  %v53 = vsel %vm39, %v18, 0
  %v56 = vsel %vm39, %v19, 0
  %v59 = vsel %vm39, %v20, 0
  %v62 = vsel %vm39, %v21, 0
  %v65 = vsel %vm39, %v22, 0
  %v68 = vsel %vm39, %v23, 0
  %v71 = vsel %vm39, %v24, 0
  %v74 = vsel %vm39, %v25, 0
  %v77 = vsel %vm39, %v26, 0
  %v80 = vsel %vm39, %v27, 0
  %v83 = vsel %vm39, %v28, 0
  %v86 = vsel %vm39, %v29, 0
  %vm88 = vcmask 1043456
  %v90 = vsel %vm88, %v34, 0
  %92 = vmatpush.msra.mxu0 0.0
  %93 = vmatpush.msra.mxu0 0.0
  %94 = vmatpush.msra.mxu0 0.0
  %95 = vmatpush.msra.mxu0 0.0
  %96 = vmatpush.msra.mxu0 0.0
  %97 = vmatpush.msra.mxu0 0.0
  %98 = vmatpush.msra.mxu0 0.0
  %99 = vmatpush.msra.mxu0 0.0
  %100 = vmatpush.msra.mxu0 0.0
  %101 = vmatpush.msra.mxu0 0.0
  %102 = vmatpush.msra.mxu0 0.0
  %103 = vmatpush.msra.mxu0 %v90
  %104 = vmatpush.msra.mxu0 %v33
  %105 = vmatpush.msra.mxu0 %v32
  %106 = vmatpush.msra.mxu0 %v31
  %107 = vmatpush.msra.mxu0 %v30
  %108 = vmatmul.f32.gmra.mxu0 %v41
  %v109 = vpop.f32.mrf.mxu0
  %v110 = vadd.f32 %v37, %v109
  %111 = vmatmul.f32.gmra.mxu0 %v44
  %v112 = vpop.f32.mrf.mxu0
  %v113 = vadd.f32 %v37, %v112
  %114 = vmatmul.f32.gmra.mxu0 %v47
  %v115 = vpop.f32.mrf.mxu0
  %v116 = vadd.f32 %v37, %v115
  %117 = vmatmul.f32.gmra.mxu0 %v50
  %v118 = vpop.f32.mrf.mxu0
  %v119 = vadd.f32 %v37, %v118
  %120 = vmatmul.f32.gmra.mxu0 %v53
  %v121 = vpop.f32.mrf.mxu0
  %v122 = vadd.f32 %v37, %v121
  %123 = vmatmul.f32.gmra.mxu0 %v56
  %v124 = vpop.f32.mrf.mxu0
  %v125 = vadd.f32 %v37, %v124
  %126 = vmatmul.f32.gmra.mxu0 %v59
  %v127 = vpop.f32.mrf.mxu0
  %v128 = vadd.f32 %v37, %v127
  %129 = vmatmul.f32.gmra.mxu0 %v62
  %v130 = vpop.f32.mrf.mxu0
  %v131 = vadd.f32 %v37, %v130
  %132 = vmatmul.f32.gmra.mxu0 %v65
  %v133 = vpop.f32.mrf.mxu0
  %v134 = vadd.f32 %v37, %v133
  %135 = vmatmul.f32.gmra.mxu0 %v68
  %v136 = vpop.f32.mrf.mxu0
  %v137 = vadd.f32 %v37, %v136
  %138 = vmatmul.f32.gmra.mxu0 %v71
  %v139 = vpop.f32.mrf.mxu0
  %v140 = vadd.f32 %v37, %v139
  %141 = vmatmul.f32.gmra.mxu0 %v74
  %v142 = vpop.f32.mrf.mxu0
  %v143 = vadd.f32 %v37, %v142
  %144 = vmatmul.f32.gmra.mxu0 %v77
  %v145 = vpop.f32.mrf.mxu0
  %v146 = vadd.f32 %v37, %v145
  %147 = vmatmul.f32.gmra.mxu0 %v80
  %v148 = vpop.f32.mrf.mxu0
  %v149 = vadd.f32 %v37, %v148
  %150 = vmatmul.f32.gmra.mxu0 %v83
  %v151 = vpop.f32.mrf.mxu0
  %v152 = vadd.f32 %v37, %v151
  %153 = vmatmul.f32.gmra.mxu0 %v86
  %v154 = vpop.f32.mrf.mxu0
  %v155 = vadd.f32 %v37, %v154
  %156 = vdwg.mxu0
  %v157 = vmax.f32 %v110, 0.0
  %v158 = vmax.f32 %v113, 0.0
  %v159 = vmax.f32 %v116, 0.0
  %v160 = vmax.f32 %v119, 0.0
  %v161 = vmax.f32 %v122, 0.0
  %v162 = vmax.f32 %v125, 0.0
  %v163 = vmax.f32 %v128, 0.0
  %v164 = vmax.f32 %v131, 0.0
  %v165 = vmax.f32 %v134, 0.0
  %v166 = vmax.f32 %v137, 0.0
  %v167 = vmax.f32 %v140, 0.0
  %v168 = vmax.f32 %v143, 0.0
  %v169 = vmax.f32 %v146, 0.0
  %v170 = vmax.f32 %v149, 0.0
  %v171 = vmax.f32 %v152, 0.0
  %v172 = vmax.f32 %v155, 0.0
  %vm173 = vcmask 64512
  %174 = vst.msk [vmem:[%s3] sm:$0xff] %vm173, %v157
  %175 = vst.msk [vmem:[%s3 + $0x8] sm:$0xff] %vm173, %v158
  %176 = vst.msk [vmem:[%s3 + $0x10] sm:$0xff] %vm173, %v159
  %177 = vst.msk [vmem:[%s3 + $0x18] sm:$0xff] %vm173, %v160
  %178 = vst.msk [vmem:[%s3 + $0x20] sm:$0xff] %vm173, %v161
  %179 = vst.msk [vmem:[%s3 + $0x28] sm:$0xff] %vm173, %v162
  %180 = vst.msk [vmem:[%s3 + $0x30] sm:$0xff] %vm173, %v163
  %181 = vst.msk [vmem:[%s3 + $0x38] sm:$0xff] %vm173, %v164
  %182 = vst.msk [vmem:[%s3 + $0x40] sm:$0xff] %vm173, %v165
  %183 = vst.msk [vmem:[%s3 + $0x48] sm:$0xff] %vm173, %v166
  %184 = vst.msk [vmem:[%s3 + $0x50] sm:$0xff] %vm173, %v167
  %185 = vst.msk [vmem:[%s3 + $0x58] sm:$0xff] %vm173, %v168
  %186 = vst.msk [vmem:[%s3 + $0x60] sm:$0xff] %vm173, %v169
  %187 = vst.msk [vmem:[%s3 + $0x68] sm:$0xff] %vm173, %v170
  %188 = vst.msk [vmem:[%s3 + $0x70] sm:$0xff] %vm173, %v171
  %189 = vst.msk [vmem:[%s3 + $0x78] sm:$0xff] %vm173, %v172
  // Predicated region
  $region14: #{tpu_custom_call.1} parent=0 // pred_check
    _
  $region15: #{tpu_custom_call.1} parent=0 // pred_check_branch
    %191 = sbr.rel (0) target = $region17
  $region16: #{tpu_custom_call.1} parent=0 // pred_region
    _
  $region17: #{tpu_custom_call.1} parent=0 // pred_fallthru
    _
  // Predicated region
  $region18: #{tpu_custom_call.1} parent=0 // pred_check
    _
  $region19: #{tpu_custom_call.1} parent=0 // pred_check_branch
    %193 = sbr.rel (0) target = $region21
  $region20: #{tpu_custom_call.1} parent=0 // pred_region
    _
  $region21: #{tpu_custom_call.1} parent=0 // pred_fallthru
    _

</llo_original>
